<compile_context>
chip_gen: v7x
topology: tpu7x:2x2x1
jax: 0.10.0
libtpu: 0.0.40
codegen_flags: <defaults>
</compile_context>

<pallas_src>
import functools

import jax
import jax.numpy as jnp
from jax.experimental import pallas as pl
from jax.experimental.pallas import tpu as pltpu


def _round_up(x, m):
    return (x + m - 1) // m * m


def _conv_kernel(x_ref, w_ref, b_ref, o_ref, patch_ref, *,
                 width, cin, kh_sz, kw_sz, out_w):
    """Fused shifted-patch conv-as-matmul for one batch element (one grid step).

    x_ref:     (1, Cin, HWpad)       flattened (h*W + w), zero-padded input
    w_ref:     (Cout_pad, Kh*Kw*Cin) weights, contraction idx = kh*Kw*Cin + kw*Cin + cin
    b_ref:     (Cout_pad, 1)         bias (zero-padded channels)
    o_ref:     (1, Cout_pad, OW)     output, flat index m = ho*W + wo on lanes
    patch_ref: (Kh*Kw*Cin, OW)       VMEM scratch holding the shifted-patch stack
    """
    x = x_ref[0]                                    # (Cin, HWpad)

    # Build the (Kh*Kw*Cin, OW) patch stack ONCE via static lane shifts.
    for kh in range(kh_sz):
        for kw in range(kw_sz):
            s = kh * width + kw                     # static lane shift
            kidx = kh * kw_sz + kw
            patch_ref[kidx * cin:(kidx + 1) * cin, :] = x[:, s:s + out_w]

    # One MXU contraction with K = Kh*Kw*Cin (<= 128 -> single pass) replaces
    # the previous nine K=Cin dots and eight VPU accumulate adds.
    acc = jnp.dot(w_ref[...], patch_ref[...],
                  preferred_element_type=jnp.float32)   # (Cout_pad, OW)

    # Single bias broadcast per grid step; lane-dense unmasked store.
    o_ref[0] = (acc + b_ref[...]).astype(o_ref.dtype)


def conv2d_pallas(x_nchw, weight_oihw, bias, *, stride=1):
    assert stride == 1, "module uses stride=1"
    N, Cin, H, W = x_nchw.shape
    Cout, Cin_w, Kh, Kw = weight_oihw.shape
    assert Cin == Cin_w
    Ho = H - Kh + 1
    Wo = W - Kw + 1

    HW = H * W
    OW = _round_up(Ho * W, 128)                 # lane-aligned output width
    max_shift = (Kh - 1) * W + (Kw - 1)         # largest static lane shift
    HWpad = _round_up(OW + max_shift, 128)      # every shifted slice stays in-bounds
    Cout_pad = _round_up(Cout, 8)               # sublane-aligned output channels
    KKC = Kh * Kw * Cin                         # fused contraction depth (27)

    # --- layout-only prep (tiny arrays; no im2col patch matrix in HBM) ---
    x_flat = jnp.pad(x_nchw.reshape(N, Cin, HW).astype(jnp.float32),
                     ((0, 0), (0, 0), (0, HWpad - HW)))
    # OIHW -> (Cout, Kh, Kw, Cin) -> (Cout_pad, Kh*Kw*Cin): one vreg-sized LHS
    # whose column order matches the in-kernel patch-row order (kh, kw, cin).
    w = jnp.transpose(weight_oihw, (0, 2, 3, 1)).reshape(Cout, KKC)
    w = jnp.pad(w.astype(jnp.float32), ((0, Cout_pad - Cout), (0, 0)))
    b = jnp.pad(bias.astype(jnp.float32), (0, Cout_pad - Cout)).reshape(Cout_pad, 1)

    kernel = functools.partial(
        _conv_kernel, width=W, cin=Cin, kh_sz=Kh, kw_sz=Kw, out_w=OW)

    out_padded = pl.pallas_call(
        kernel,
        out_shape=jax.ShapeDtypeStruct((N, Cout_pad, OW), jnp.float32),
        grid_spec=pltpu.PrefetchScalarGridSpec(
            num_scalar_prefetch=0,
            grid=(N,),  # batch on a parallel axis: both v7x TCs + pipelined DMA
            in_specs=[
                pl.BlockSpec((1, Cin, HWpad), lambda n: (n, 0, 0)),
                pl.BlockSpec((Cout_pad, KKC), lambda n: (0, 0)),
                pl.BlockSpec((Cout_pad, 1), lambda n: (0, 0)),
            ],
            out_specs=pl.BlockSpec((1, Cout_pad, OW), lambda n: (n, 0, 0)),
            scratch_shapes=[pltpu.VMEM((KKC, OW), jnp.float32)],
        ),
        compiler_params=pltpu.CompilerParams(
            dimension_semantics=("parallel",)),
    )(x_flat, w, b)

    # (N, Cout_pad, OW) -> NCHW: slice valid channels/rows/cols, pure reshape,
    # no transpose pass over the output.
    out = out_padded[:, :Cout, :Ho * W].reshape(N, Cout, Ho, W)[:, :, :, :Wo]
    return out.astype(x_nchw.dtype)


if __name__ == "__main__":
    key = jax.random.PRNGKey(0)
    kx, kwk, kbk = jax.random.split(key, 3)

    # Module-implied shapes: Conv2d(3, 6, 3) -> 3 input channels.
    N, Cin, H, W = 2, 3, 16, 16
    Cout, Kh, Kw = 6, 3, 3

    x = jax.random.normal(kx, (N, Cin, H, W), dtype=jnp.float32)

    # PyTorch-style uniform(-bound, bound) init, bound = 1/sqrt(fan_in).
    fan_in = Cin * Kh * Kw
    bound = 1.0 / (fan_in ** 0.5)
    weight = jax.random.uniform(kwk, (Cout, Cin, Kh, Kw), jnp.float32, -bound, bound)
    bias = jax.random.uniform(kbk, (Cout,), jnp.float32, -bound, bound)

    out = conv2d_pallas(x, weight, bias)
    out = jax.block_until_ready(out)
    assert out.shape == (N, Cout, H - Kh + 1, W - Kw + 1), out.shape

    # Sanity check against XLA's native convolution (NCHW / OIHW).
    ref = jax.lax.conv_general_dilated(
        x, weight, window_strides=(1, 1), padding="VALID",
        dimension_numbers=("NCHW", "OIHW", "NCHW"),
    ) + bias.reshape(1, Cout, 1, 1)
    assert jnp.allclose(out, ref, atol=1e-4, rtol=1e-4), \
        float(jnp.max(jnp.abs(out - ref)))

    print("KERNEL_OK")
</pallas_src>

<mosaic_0001>
module attributes {stable_mosaic.version = 11 : i64} {
  func.func @_conv_kernel(%arg0: i32, %arg1: memref<1x3x384xf32, #tpu.memory_space<vmem>>, %arg2: memref<8x27xf32, #tpu.memory_space<vmem>>, %arg3: memref<8x1xf32, #tpu.memory_space<vmem>>, %arg4: memref<1x8x256xf32, #tpu.memory_space<vmem>>, %arg5: memref<27x256xf32, #tpu.memory_space<vmem>>) attributes {dimension_semantics = [#tpu.dimension_semantics<parallel>], iteration_bounds = array<i64: 2>, scalar_prefetch = 0 : i64, scratch_operands = 1 : i64, tpu.core_type = #tpu.core_type<tc>, window_params = [{transform_indices = @transform_0, window_bounds = array<i64: 1, 3, 384>}, {pipeline_mode = #tpu.pipeline_mode<synchronous>, transform_indices = @transform_1, window_bounds = array<i64: 8, 27>}, {pipeline_mode = #tpu.pipeline_mode<synchronous>, transform_indices = @transform_2, window_bounds = array<i64: 8, 1>}, {transform_indices = @transform_3, window_bounds = array<i64: 1, 8, 256>}]} {
    %c0 = arith.constant 0 : index
    %c0_0 = arith.constant 0 : index
    %c0_1 = arith.constant 0 : index
    %0 = vector.load %arg1[%c0, %c0_0, %c0_1] : memref<1x3x384xf32, #tpu.memory_space<vmem>>, vector<1x3x384xf32>
    %1 = vector.shape_cast %0 : vector<1x3x384xf32> to vector<3x384xf32>
    %2 = vector.extract_strided_slice %1 {offsets = [0, 0], sizes = [3, 256], strides = [1, 1]} : vector<3x384xf32> to vector<3x256xf32>
    %c0_2 = arith.constant 0 : index
    %c0_3 = arith.constant 0 : index
    %3 = vector.load %arg5[%c0_2, %c0_3] : memref<27x256xf32, #tpu.memory_space<vmem>>, vector<3x256xf32>
    tpu.vector_store %arg5[%c0_2, %c0_3], %2 {strides = array<i32>} : memref<27x256xf32, #tpu.memory_space<vmem>>, vector<3x256xf32>,
    %4 = vector.extract_strided_slice %1 {offsets = [0, 1], sizes = [3, 256], strides = [1, 1]} : vector<3x384xf32> to vector<3x256xf32>
    %c3 = arith.constant 3 : index
    %c0_4 = arith.constant 0 : index
    %5 = vector.load %arg5[%c3, %c0_4] : memref<27x256xf32, #tpu.memory_space<vmem>>, vector<3x256xf32>
    tpu.vector_store %arg5[%c3, %c0_4], %4 {strides = array<i32>} : memref<27x256xf32, #tpu.memory_space<vmem>>, vector<3x256xf32>,
    %6 = vector.extract_strided_slice %1 {offsets = [0, 2], sizes = [3, 256], strides = [1, 1]} : vector<3x384xf32> to vector<3x256xf32>
    %c6 = arith.constant 6 : index
    %c0_5 = arith.constant 0 : index
    %7 = vector.load %arg5[%c6, %c0_5] : memref<27x256xf32, #tpu.memory_space<vmem>>, vector<3x256xf32>
    tpu.vector_store %arg5[%c6, %c0_5], %6 {strides = array<i32>} : memref<27x256xf32, #tpu.memory_space<vmem>>, vector<3x256xf32>,
    %8 = vector.extract_strided_slice %1 {offsets = [0, 16], sizes = [3, 256], strides = [1, 1]} : vector<3x384xf32> to vector<3x256xf32>
    %c9 = arith.constant 9 : index
    %c0_6 = arith.constant 0 : index
    %9 = vector.load %arg5[%c9, %c0_6] : memref<27x256xf32, #tpu.memory_space<vmem>>, vector<3x256xf32>
    tpu.vector_store %arg5[%c9, %c0_6], %8 {strides = array<i32>} : memref<27x256xf32, #tpu.memory_space<vmem>>, vector<3x256xf32>,
    %10 = vector.extract_strided_slice %1 {offsets = [0, 17], sizes = [3, 256], strides = [1, 1]} : vector<3x384xf32> to vector<3x256xf32>
    %c12 = arith.constant 12 : index
    %c0_7 = arith.constant 0 : index
    %11 = vector.load %arg5[%c12, %c0_7] : memref<27x256xf32, #tpu.memory_space<vmem>>, vector<3x256xf32>
    tpu.vector_store %arg5[%c12, %c0_7], %10 {strides = array<i32>} : memref<27x256xf32, #tpu.memory_space<vmem>>, vector<3x256xf32>,
    %12 = vector.extract_strided_slice %1 {offsets = [0, 18], sizes = [3, 256], strides = [1, 1]} : vector<3x384xf32> to vector<3x256xf32>
    %c15 = arith.constant 15 : index
    %c0_8 = arith.constant 0 : index
    %13 = vector.load %arg5[%c15, %c0_8] : memref<27x256xf32, #tpu.memory_space<vmem>>, vector<3x256xf32>
    tpu.vector_store %arg5[%c15, %c0_8], %12 {strides = array<i32>} : memref<27x256xf32, #tpu.memory_space<vmem>>, vector<3x256xf32>,
    %14 = vector.extract_strided_slice %1 {offsets = [0, 32], sizes = [3, 256], strides = [1, 1]} : vector<3x384xf32> to vector<3x256xf32>
    %c18 = arith.constant 18 : index
    %c0_9 = arith.constant 0 : index
    %15 = vector.load %arg5[%c18, %c0_9] : memref<27x256xf32, #tpu.memory_space<vmem>>, vector<3x256xf32>
    tpu.vector_store %arg5[%c18, %c0_9], %14 {strides = array<i32>} : memref<27x256xf32, #tpu.memory_space<vmem>>, vector<3x256xf32>,
    %16 = vector.extract_strided_slice %1 {offsets = [0, 33], sizes = [3, 256], strides = [1, 1]} : vector<3x384xf32> to vector<3x256xf32>
    %c21 = arith.constant 21 : index
    %c0_10 = arith.constant 0 : index
    %17 = vector.load %arg5[%c21, %c0_10] : memref<27x256xf32, #tpu.memory_space<vmem>>, vector<3x256xf32>
    tpu.vector_store %arg5[%c21, %c0_10], %16 {strides = array<i32>} : memref<27x256xf32, #tpu.memory_space<vmem>>, vector<3x256xf32>,
    %18 = vector.extract_strided_slice %1 {offsets = [0, 34], sizes = [3, 256], strides = [1, 1]} : vector<3x384xf32> to vector<3x256xf32>
    %c24 = arith.constant 24 : index
    %c0_11 = arith.constant 0 : index
    %19 = vector.load %arg5[%c24, %c0_11] : memref<27x256xf32, #tpu.memory_space<vmem>>, vector<3x256xf32>
    tpu.vector_store %arg5[%c24, %c0_11], %18 {strides = array<i32>} : memref<27x256xf32, #tpu.memory_space<vmem>>, vector<3x256xf32>,
    %c0_12 = arith.constant 0 : index
    %c0_13 = arith.constant 0 : index
    %20 = vector.load %arg2[%c0_12, %c0_13] : memref<8x27xf32, #tpu.memory_space<vmem>>, vector<8x27xf32>
    %c0_14 = arith.constant 0 : index
    %c0_15 = arith.constant 0 : index
    %21 = vector.load %arg5[%c0_14, %c0_15] : memref<27x256xf32, #tpu.memory_space<vmem>>, vector<27x256xf32>
    %cst = arith.constant dense<0.000000e+00> : vector<8x256xf32>
    %22 = tpu.matmul %20, %21, %cst {dimension_numbers = #tpu.dot_dimension_numbers<[1], [0], [0], [1], [0, 0, 1, 1], [], []>} : vector<8x27xf32>, vector<27x256xf32>, vector<8x256xf32> -> vector<8x256xf32>
    %c0_16 = arith.constant 0 : index
    %c0_17 = arith.constant 0 : index
    %23 = vector.load %arg3[%c0_16, %c0_17] : memref<8x1xf32, #tpu.memory_space<vmem>>, vector<8x1xf32>
    %24 = vector.broadcast %23 : vector<8x1xf32> to vector<8x256xf32>
    %25 = arith.addf %22, %24 : vector<8x256xf32>
    %c0_18 = arith.constant 0 : index
    %c0_19 = arith.constant 0 : index
    %c0_20 = arith.constant 0 : index
    %26 = vector.load %arg4[%c0_18, %c0_19, %c0_20] : memref<1x8x256xf32, #tpu.memory_space<vmem>>, vector<1x8x256xf32>
    %27 = vector.shape_cast %26 : vector<1x8x256xf32> to vector<8x256xf32>
    %28 = vector.shape_cast %25 : vector<8x256xf32> to vector<1x8x256xf32>
    tpu.vector_store %arg4[%c0_18, %c0_19, %c0_20], %28 {strides = array<i32>} : memref<1x8x256xf32, #tpu.memory_space<vmem>>, vector<1x8x256xf32>,
    return
  }
  func.func @transform_0(%arg0: i32) -> (i32, i32, i32) {
    %c0_i32 = arith.constant 0 : i32
    %c0_i32_0 = arith.constant 0 : i32
    %c0_i32_1 = arith.constant 0 : i32
    return %arg0, %c0_i32, %c0_i32_0 : i32, i32, i32
  }
  func.func @transform_1(%arg0: i32) -> (i32, i32) {
    %c0_i32 = arith.constant 0 : i32
    %c0_i32_0 = arith.constant 0 : i32
    %c0_i32_1 = arith.constant 0 : i32
    return %c0_i32, %c0_i32_0 : i32, i32
  }
  func.func @transform_2(%arg0: i32) -> (i32, i32) {
    %c0_i32 = arith.constant 0 : i32
    %c0_i32_0 = arith.constant 0 : i32
    %c0_i32_1 = arith.constant 0 : i32
    return %c0_i32, %c0_i32_0 : i32, i32
  }
  func.func @transform_3(%arg0: i32) -> (i32, i32, i32) {
    %c0_i32 = arith.constant 0 : i32
    %c0_i32_0 = arith.constant 0 : i32
    %c0_i32_1 = arith.constant 0 : i32
    return %arg0, %c0_i32, %c0_i32_0 : i32, i32, i32
  }
}

</mosaic_0001>

<llo_original>
// kernel: tpu_custom_call.1
$region0: #{tpu_custom_call.1}
  #allocation0 [shape = 'u32[]', space=smem, size = 0x4, offset = 0x4, fixed_abs, tag = 'smem constant byte address 0x4 - core index']
  #allocation1 [shape = 'u32[144,128]{1,0:T(1,128)}', space=vmem, size = 0x12000, scoped, tag = 'internal scratch']
  #allocation2 [shape = 'f32[27,256]{1,0:T(8,128)}', space=vmem, size = 0x8000, scoped, tag = 'scratch operand']
  %s0 = inlined_call_operand.vmem [shape: f32[2,3,384], index: 0, kind: input, shape index: {}]
  %s1 = inlined_call_operand.vmem [shape: f32[8,27], index: 1, kind: input, shape index: {}]
  %s2 = inlined_call_operand.vmem [shape: f32[8,1], index: 2, kind: input, shape index: {}]
  %s3 = inlined_call_operand.hbm [shape: f32[2,8,256], index: 3, kind: output, shape index: {}]
  %s4 = sld [smem:[#allocation0]]
  $region45: #{tpu_custom_call.1} parent=0
    _
  %s6 = ssub.s32 1, %s4
  %s7 = scalar_select 0, %s6, %s4
  $region1: #{tpu_custom_call.1} parent=0
    #allocation3 [shape = 'u8[16384]{0}', space=vmem, size = 0x4000, scoped, tag = 'output window, operand 0']
    #allocation4 [shape = 's32[2]{0}', space=sflag, size = 0x8, scoped, tag = 'scoped memory for tpu_custom_call.1']
    %8 = vsyncpa [#allocation4], 0
    %s9 = scalar_lea.sflag [#allocation4], 1
    %10 = vsyncpa %s9, 0
    loop: start=0, step=1, limit=4
    $region2: #{tpu_custom_call.1} parent=1 // loop_pre_header
      _
    $region3: #{tpu_custom_call.1} parent=1 // loop_header
      %s12 = sphi 0, %s16
      %p13 = scmp.ge.s32.totalorder %s12, 4
      %s22 = sphi 0, %s24
      %s25 = sphi 0, %s22
      %s26 = sphi 0, %s25
      %s42 = sphi 0, %s26
      %s46 = sphi 0, %s46
      %s48 = sphi 0, %s46
      %s49 = sphi 0, %s48
      %s63 = sphi 0, %s49
      %s67 = sphi 0, %s67
      %s69 = sphi 0, %s67
      %s70 = sphi 0, %s69
      %s84 = sphi 0, %s70
      %s90 = sphi 0, %s92
      %s93 = sphi 0, %s90
      %s94 = sphi 0, %s93
      %s110 = sphi 0, %s94
    $region4: #{tpu_custom_call.1} parent=1 // loop_header_branch
      %15 = sbr.rel (%p13) target = $region8
    $region5: #{tpu_custom_call.1} parent=1 // loop_body
      %s17 = ssub.s32 %s12, 1
      %s18 = ssub.s32 %s12, 2
      %s19 = sadd.s32 %s12, 1
      %s20 = ssub.s32 %s12, %s19
      %p21 = scmp.eq.s32.totalorder %s20, 0
      %s23 = sadd.s32 %s22, 1
      %s24 = scalar_select %p21, %s22, %s23
      %p27 = pneg %p21
      %p28 = scmp.eq.s32.totalorder %s12, 1
      %p29 = por %p27, %p28
      %p30 = scmp.ne.s32.totalorder %s22, %s25
      %p31 = scmp.eq.s32.totalorder %s12, 0
      %p32 = por %p30, %p31
      %p33 = scmp.ne.s32.totalorder %s22, %s25
      %p34 = scmp.eq.s32.totalorder %s17, 1
      %p35 = por %p33, %p34
      %p36 = scmp.ne.s32.totalorder %s25, %s26
      %p37 = scmp.eq.s32.totalorder %s17, 0
      %p38 = por %p36, %p37
      %p39 = scmp.ne.s32.totalorder %s25, %s26
      %p40 = scmp.eq.s32.totalorder %s18, 1
      %p41 = por %p39, %p40
      %p43 = scmp.ne.s32.totalorder %s26, %s42
      %p44 = scmp.eq.s32.totalorder %s18, 0
      %p45 = por %p43, %p44
      %s47 = sadd.s32 %s46, 1
      %p50 = scmp.eq.s32.totalorder %s12, 1
      %p51 = scmp.ne.s32.totalorder %s46, %s48
      %p52 = scmp.eq.s32.totalorder %s12, 0
      %p53 = por %p51, %p52
      %p54 = scmp.ne.s32.totalorder %s46, %s48
      %p55 = scmp.eq.s32.totalorder %s17, 1
      %p56 = por %p54, %p55
      %p57 = scmp.ne.s32.totalorder %s48, %s49
      %p58 = scmp.eq.s32.totalorder %s17, 0
      %p59 = por %p57, %p58
      %p60 = scmp.ne.s32.totalorder %s48, %s49
      %p61 = scmp.eq.s32.totalorder %s18, 1
      %p62 = por %p60, %p61
      %p64 = scmp.ne.s32.totalorder %s49, %s63
      %p65 = scmp.eq.s32.totalorder %s18, 0
      %p66 = por %p64, %p65
      %s68 = sadd.s32 %s67, 1
      %p71 = scmp.eq.s32.totalorder %s12, 1
      %p72 = scmp.ne.s32.totalorder %s67, %s69
      %p73 = scmp.eq.s32.totalorder %s12, 0
      %p74 = por %p72, %p73
      %p75 = scmp.ne.s32.totalorder %s67, %s69
      %p76 = scmp.eq.s32.totalorder %s17, 1
      %p77 = por %p75, %p76
      %p78 = scmp.ne.s32.totalorder %s69, %s70
      %p79 = scmp.eq.s32.totalorder %s17, 0
      %p80 = por %p78, %p79
      %p81 = scmp.ne.s32.totalorder %s69, %s70
      %p82 = scmp.eq.s32.totalorder %s18, 1
      %p83 = por %p81, %p82
      %p85 = scmp.ne.s32.totalorder %s70, %s84
      %p86 = scmp.eq.s32.totalorder %s18, 0
      %p87 = por %p85, %p86
      %s88 = ssub.s32 %s12, %s19
      %p89 = scmp.eq.s32.totalorder %s88, 0
      %s91 = sadd.s32 %s90, 1
      %s92 = scalar_select %p89, %s90, %s91
      %p95 = pneg %p89
      %p96 = scmp.eq.s32.totalorder %s12, 1
      %p97 = por %p95, %p96
      %p98 = scmp.ne.s32.totalorder %s90, %s93
      %p99 = scmp.eq.s32.totalorder %s12, 0
      %p100 = por %p98, %p99
      %p101 = scmp.ne.s32.totalorder %s90, %s93
      %p102 = scmp.eq.s32.totalorder %s17, 1
      %p103 = por %p101, %p102
      %p104 = scmp.ne.s32.totalorder %s93, %s94
      %p105 = scmp.eq.s32.totalorder %s17, 0
      %p106 = por %p104, %p105
      %p107 = scmp.ne.s32.totalorder %s93, %s94
      %p108 = scmp.eq.s32.totalorder %s18, 1
      %p109 = por %p107, %p108
      %p111 = scmp.ne.s32.totalorder %s94, %s110
      %p112 = scmp.eq.s32.totalorder %s18, 0
      %p113 = por %p111, %p112
      %p114 = scmp.le.s32.totalorder 1, %s12
      %p115 = scmp.lt.s32.totalorder %s12, 3
      %p116 = pnand %p114, %p115
      %p117 = pneg %p116
      // Predicated region
      $region9: #{tpu_custom_call.1} parent=5 // pred_check
        _
      $region10: #{tpu_custom_call.1} parent=5 // pred_check_branch
        %119 = sbr.rel (%p116) target = $region12
      $region11: #{tpu_custom_call.1} parent=5 // pred_region
        %s120 = ssub.s32 %s12, 1
        // Predicated region
        $region13: #{tpu_custom_call.1} parent=11 // pred_check
          %p121 = pneg %p59
        $region14: #{tpu_custom_call.1} parent=11 // pred_check_branch
          %123 = sbr.rel (%p121) target = $region16
        $region15: #{tpu_custom_call.1} parent=11 // pred_region
          _
        $region16: #{tpu_custom_call.1} parent=11 // pred_fallthru
          _
        // Predicated region
        $region17: #{tpu_custom_call.1} parent=11 // pred_check
          %p124 = pneg %p80
        $region18: #{tpu_custom_call.1} parent=11 // pred_check_branch
          %126 = sbr.rel (%p124) target = $region20
        $region19: #{tpu_custom_call.1} parent=11 // pred_region
          _
        $region20: #{tpu_custom_call.1} parent=11 // pred_fallthru
          _
      $region12: #{tpu_custom_call.1} parent=5 // pred_fallthru
        _
      %p127 = scmp.lt.s32.totalorder %s12, 2
      // Predicated region
      $region21: #{tpu_custom_call.1} parent=5 // pred_check
        %p128 = pneg %p127
      $region22: #{tpu_custom_call.1} parent=5 // pred_check_branch
        %130 = sbr.rel (%p128) target = $region24
      $region23: #{tpu_custom_call.1} parent=5 // pred_region
        // Predicated region
        $region25: #{tpu_custom_call.1} parent=23 // pred_check
          %p131 = pneg %p32
        $region26: #{tpu_custom_call.1} parent=23 // pred_check_branch
          %133 = sbr.rel (%p131) target = $region28
        $region27: #{tpu_custom_call.1} parent=23 // pred_region
          %p134 = scmp.lt.s32.totalorder %s12, 1
          %s135 = scalar_select %p134, %s12, 1
          %s136 = smul.addr %s135, 3
          %s137 = smul.addr %s136, 4
          %s138 = scalar_lea.vmem %s0, %s137
        $region28: #{tpu_custom_call.1} parent=23 // pred_fallthru
          _
      $region24: #{tpu_custom_call.1} parent=5 // pred_fallthru
        _
      %p139 = scmp.le.s32.totalorder 1, %s12
      %p140 = scmp.lt.s32.totalorder %s12, 3
      %p141 = pnand %p139, %p140
      %p142 = pneg %p141
      // Predicated region
      $region29: #{tpu_custom_call.1} parent=5 // pred_check
        _
      $region30: #{tpu_custom_call.1} parent=5 // pred_check_branch
        %144 = sbr.rel (%p141) target = $region32
      $region31: #{tpu_custom_call.1} parent=5 // pred_region
        %s145 = ssub.s32 %s12, 1
        %p146 = scmp.lt.s32.totalorder %s17, 1
        %s147 = scalar_select %p146, %s17, 1
        %s148 = smul.addr %s147, 3
        %s149 = smul.addr %s148, 4
        %s150 = scalar_lea.vmem %s0, %s149
        %p151 = pneg %p38
        %p152 = pneg %p35
        %p153 = pneg %p59
        %p154 = pneg %p56
        %p155 = pneg %p80
        %p156 = pneg %p77
        %p157 = pneg %p106
        %p158 = pneg %p103
        %s159 = sand.u32 %s93, 1
        %s160 = scalar_lea.sflag [#allocation4], %s159
        %s161 = sand.u32 %s93, 1
        %s162 = smul.addr %s161, 16
        %s163 = scalar_lea.vmem [#allocation3], %s162
        %p164 = scmp.lt.s32.totalorder %s17, 1
        %s165 = scalar_select %p164, %s17, 1
        %s166 = smul.addr %s165, 3
        %s167 = smul.addr %s166, 4
        %s168 = scalar_lea.vmem %s0, %s167
        %v169 = vld [vmem:[%s168] sm:$0x77]
        %v170 = vld [vmem:[%s168 + $0x8] sm:$0x7]
        %v172 = vcombine.high %v169, %v169
        %174 = vst [vmem:[#allocation2] sm:$0x7] %v169
        %175 = vst [vmem:[#allocation2 + $0x8] sm:$0x7] %v172
        %v177 = vrot.slane %v169, 5
        %v178 = vrot.slane %v172, 5
        %v179 = vrot.slane %v170, 5
        %180 = vrot.lane.b32.xlu0 %v177, 127
        %v181 = vpop.permute.xlu0 %180
        %182 = vrot.lane.b32.xlu0 %v178, 127
        %v183 = vpop.permute.xlu0 %182
        %184 = vrot.lane.b32.xlu0 %v179, 127
        %v185 = vpop.permute.xlu0 %184
        %vm186 = vcmask 1039360
        %v187 = vsel %vm186, %v181, %v183
        %v188 = vsel %vm186, %v183, %v185
        %191 = vst [vmem:[#allocation2] sm:$0x38] %v187
        %192 = vst [vmem:[#allocation2 + $0x8] sm:$0x38] %v188
        %v193 = vrot.slane %v169, 2
        %v194 = vrot.slane %v172, 2
        %v195 = vrot.slane %v170, 2
        %196 = vrot.lane.b32.xlu0 %v193, 126
        %v197 = vpop.permute.xlu0 %196
        %198 = vrot.lane.b32.xlu0 %v194, 126
        %v199 = vpop.permute.xlu0 %198
        %200 = vrot.lane.b32.xlu0 %v195, 126
        %v201 = vpop.permute.xlu0 %200
        %vm202 = vcmask 1031168
        %v203 = vsel %vm202, %v197, %v199
        %v204 = vsel %vm202, %v199, %v201
        %207 = vst [vmem:[#allocation2] sm:$0xc0] %v203
        %208 = vst [vmem:[#allocation2 + $0x8] sm:$0xc0] %v204
        %209 = vst [vmem:[#allocation2 + $0x10] sm:$0x1] %v203
        %210 = vst [vmem:[#allocation2 + $0x18] sm:$0x1] %v204
        %v211 = vrot.slane %v169, 7
        %v212 = vrot.slane %v172, 7
        %v213 = vrot.slane %v170, 7
        %214 = vrot.lane.b32.xlu0 %v211, 112
        %v215 = vpop.permute.xlu0 %214
        %216 = vrot.lane.b32.xlu0 %v212, 112
        %v217 = vpop.permute.xlu0 %216
        %218 = vrot.lane.b32.xlu0 %v213, 112
        %v219 = vpop.permute.xlu0 %218
        %vm220 = vcmask 916480
        %v221 = vsel %vm220, %v215, %v217
        %v222 = vsel %vm220, %v217, %v219
        %225 = vst [vmem:[#allocation2 + $0x10] sm:$0xe] %v221
        %226 = vst [vmem:[#allocation2 + $0x18] sm:$0xe] %v222
        %v227 = vcombine.low %v169, %v169
        %v228 = vcombine.low %v170, %v170
        %229 = vrot.lane.b32.xlu0 %v227, 111
        %v230 = vpop.permute.xlu0 %229
        %231 = vrot.lane.b32.xlu0 %v169, 111
        %v232 = vpop.permute.xlu0 %231
        %233 = vrot.lane.b32.xlu0 %v228, 111
        %v234 = vpop.permute.xlu0 %233
        %vm235 = vcmask 908288
        %v236 = vsel %vm235, %v230, %v232
        %v237 = vsel %vm235, %v232, %v234
        %240 = vst [vmem:[#allocation2 + $0x10] sm:$0x70] %v236
        %241 = vst [vmem:[#allocation2 + $0x18] sm:$0x70] %v237
        %v242 = vrot.slane %v169, 1
        %v243 = vrot.slane %v172, 1
        %v244 = vrot.slane %v170, 1
        %245 = vrot.lane.b32.xlu0 %v242, 110
        %v246 = vpop.permute.xlu0 %245
        %247 = vrot.lane.b32.xlu0 %v243, 110
        %v248 = vpop.permute.xlu0 %247
        %249 = vrot.lane.b32.xlu0 %v244, 110
        %v250 = vpop.permute.xlu0 %249
        %vm251 = vcmask 900096
        %v252 = vsel %vm251, %v246, %v248
        %v253 = vsel %vm251, %v248, %v250
        %256 = vst [vmem:[#allocation2 + $0x10] sm:$0x80] %v252
        %257 = vst [vmem:[#allocation2 + $0x18] sm:$0x80] %v253
        %258 = vst [vmem:[#allocation2 + $0x20] sm:$0x3] %v252
        %259 = vst [vmem:[#allocation2 + $0x28] sm:$0x3] %v253
        %v260 = vrot.slane %v169, 6
        %v261 = vrot.slane %v172, 6
        %v262 = vrot.slane %v170, 6
        %263 = vrot.lane.b32.xlu0 %v260, 96
        %v264 = vpop.permute.xlu0 %263
        %265 = vrot.lane.b32.xlu0 %v261, 96
        %v266 = vpop.permute.xlu0 %265
        %267 = vrot.lane.b32.xlu0 %v262, 96
        %v268 = vpop.permute.xlu0 %267
        %vm269 = vcmask 785408
        %v270 = vsel %vm269, %v264, %v266
        %v271 = vsel %vm269, %v266, %v268
        %274 = vst [vmem:[#allocation2 + $0x20] sm:$0x1c] %v270
        %275 = vst [vmem:[#allocation2 + $0x28] sm:$0x1c] %v271
        %v276 = vrot.slane %v169, 3
        %v277 = vrot.slane %v172, 3
        %v278 = vrot.slane %v170, 3
        %279 = vrot.lane.b32.xlu0 %v276, 95
        %v280 = vpop.permute.xlu0 %279
        %281 = vrot.lane.b32.xlu0 %v277, 95
        %v282 = vpop.permute.xlu0 %281
        %283 = vrot.lane.b32.xlu0 %v278, 95
        %v284 = vpop.permute.xlu0 %283
        %vm285 = vcmask 777216
        %v286 = vsel %vm285, %v280, %v282
        %v287 = vsel %vm285, %v282, %v284
        %290 = vst [vmem:[#allocation2 + $0x20] sm:$0xe0] %v286
        %291 = vst [vmem:[#allocation2 + $0x28] sm:$0xe0] %v287
        %292 = vrot.lane.b32.xlu0 %v169, 94
        %v293 = vpop.permute.xlu0 %292
        %294 = vrot.lane.b32.xlu0 %v172, 94
        %v295 = vpop.permute.xlu0 %294
        %296 = vrot.lane.b32.xlu0 %v170, 94
        %v297 = vpop.permute.xlu0 %296
        %vm298 = vcmask 769024
        %v299 = vsel %vm298, %v293, %v295
        %v300 = vsel %vm298, %v295, %v297
        %303 = vst [vmem:[#allocation2 + $0x30] sm:$0x7] %v299
        %304 = vst [vmem:[#allocation2 + $0x38] sm:$0x7] %v300
        %v305 = vld [vmem:[%s1] sm:$0xff]
        %v306 = vld [vmem:[#allocation2] sm:$0xff]
        %v307 = vld [vmem:[#allocation2 + $0x8] sm:$0xff]
        %v308 = vld [vmem:[#allocation2 + $0x10] sm:$0xff]
        %v309 = vld [vmem:[#allocation2 + $0x18] sm:$0xff]
        %v310 = vld [vmem:[#allocation2 + $0x20] sm:$0xff]
        %v311 = vld [vmem:[#allocation2 + $0x28] sm:$0xff]
        %v312 = vld [vmem:[#allocation2 + $0x30] sm:$0x7]
        %v313 = vld [vmem:[#allocation2 + $0x38] sm:$0x7]
        %v314 = vld [vmem:[%s2] sm:$0xff]
        %316 = vset.pattern.permute.xlu0 0
        %317 = vperm.xlu0 %316, %v314
        %v318 = vpop.permute.xlu0 %317
        %vm320 = vcmask 220160
        %v322 = vsel %vm320, %v305, 0
        %vm324 = vcmask 1042432
        %v326 = vsel %vm324, %v312, 0
        %v329 = vsel %vm324, %v313, 0
        %331 = vmatprep.subr.mxu0 %v307
        %332 = vmatpush1.msra.mxu0 %v306
        %333 = vmatprep.subr.mxu0 %v309
        %334 = vmatpush1.msra.mxu0 %v308
        %335 = vmatprep.subr.mxu0 %v311
        %336 = vmatpush1.msra.mxu0 %v310
        %337 = vmatprep.subr.mxu0 %v329
        %338 = vmatpush1.msra.mxu0 %v326
        %339 = vmatprep.subr.mxu0 0.0
        %340 = vmatpush1.msra.mxu0 0.0
        %341 = vmatprep.subr.mxu0 0.0
        %342 = vmatpush1.msra.mxu0 0.0
        %343 = vmatprep.subr.mxu0 0.0
        %344 = vmatpush1.msra.mxu0 0.0
        %345 = vmatprep.subr.mxu0 0.0
        %346 = vmatpush1.msra.mxu0 0.0
        %347 = vmatprep.subr.mxu0 0.0
        %348 = vmatpush1.msra.mxu0 0.0
        %349 = vmatprep.subr.mxu0 0.0
        %350 = vmatpush1.msra.mxu0 0.0
        %351 = vmatprep.subr.mxu0 0.0
        %352 = vmatpush1.msra.mxu0 0.0
        %353 = vmatprep.subr.mxu0 0.0
        %354 = vmatpush1.msra.mxu0 0.0
        %355 = vmatprep.subr.mxu0 0.0
        %356 = vmatpush1.msra.mxu0 0.0
        %357 = vmatprep.subr.mxu0 0.0
        %358 = vmatpush1.msra.mxu0 0.0
        %359 = vmatprep.subr.mxu0 0.0
        %360 = vmatpush1.msra.mxu0 0.0
        %361 = vmatprep.subr.mxu0 0.0
        %362 = vmatpush1.msra.mxu0 0.0
        %363 = vmatprep.subr.mxu0 0.0
        %364 = vmatpush1.msra.mxu0 0.0
        %365 = vmatprep.subr.mxu0 0.0
        %366 = vmatpush1.msra.mxu0 0.0
        %367 = vmatprep.subr.mxu0 0.0
        %368 = vmatpush1.msra.mxu0 0.0
        %369 = vmatprep.subr.mxu0 0.0
        %370 = vmatpush1.msra.mxu0 0.0
        %371 = vmatprep.subr.mxu0 0.0
        %372 = vmatpush1.msra.mxu0 0.0
        %373 = vmatprep.subr.mxu0 0.0
        %374 = vmatpush1.msra.mxu0 0.0
        %375 = vmatprep.subr.mxu0 0.0
        %376 = vmatpush1.msra.mxu0 0.0
        %377 = vmatprep.subr.mxu0 0.0
        %378 = vmatpush1.msra.mxu0 0.0
        %379 = vmatprep.subr.mxu0 0.0
        %380 = vmatpush1.msra.mxu0 0.0
        %381 = vmatprep.subr.mxu0 0.0
        %382 = vmatpush1.msra.mxu0 0.0
        %383 = vmatprep.subr.mxu0 0.0
        %384 = vmatpush1.msra.mxu0 0.0
        %385 = vmatprep.subr.mxu0 0.0
        %386 = vmatpush1.msra.mxu0 0.0
        %387 = vmatprep.subr.mxu0 0.0
        %388 = vmatpush1.msra.mxu0 0.0
        %389 = vmatprep.subr.mxu0 0.0
        %390 = vmatpush1.msra.mxu0 0.0
        %391 = vmatprep.subr.mxu0 0.0
        %392 = vmatpush1.msra.mxu0 0.0
        %393 = vmatprep.subr.mxu0 0.0
        %394 = vmatpush1.msra.mxu0 0.0
        %395 = vmatprep.mubr.f32.mxu0 0.0
        %396 = vmatmul.mubr.f32.gmra.mrb[0].mxu0 %v322
        %v397 = vpop.f32.mrb[0].mxu0
        %v398 = vadd.f32 %v318, %v397
        %v399 = vpop.f32.mrb[0].mxu0
        %v400 = vadd.f32 %v318, %v399
        %401 = vdwg.mxu0
        %402 = vst [vmem:[%s163] sm:$0xff] %v398
        %403 = vst [vmem:[%s163 + $0x8] sm:$0xff] %v400
        %s404 = sand.u32 %s93, 1
        %s405 = scalar_lea.sflag [#allocation4], %s404
        %s406 = sand.u32 %s93, 1
        %s407 = smul.addr %s406, 16
        %s408 = scalar_lea.vmem [#allocation3], %s407
        // Predicated region
        $region33: #{tpu_custom_call.1} parent=31 // pred_check
          %p409 = pneg %p103
        $region34: #{tpu_custom_call.1} parent=31 // pred_check_branch
          %411 = sbr.rel (%p409) target = $region36
        $region35: #{tpu_custom_call.1} parent=31 // pred_region
          %s413 = ssub.s32 256, 256
          %414 = vsyncadd %s405, %s413
          %s415 = smul.addr %s17, 2
          %s416 = smul.addr %s415, 128
          %s417 = scalar_lea.hbm %s3, %s416
          %s419 = sshll.u32 %s408, 4
          %s420 = int_to_ptr.vmem [resolvable:$true] %s419
          %422 = dma.vmem_to_hbm [thread:$0]  %s420, 256, %s417, %s405
        $region36: #{tpu_custom_call.1} parent=31 // pred_fallthru
          _
      $region32: #{tpu_custom_call.1} parent=5 // pred_fallthru
        _
      %p423 = scmp.le.s32.totalorder 2, %s12
      // Predicated region
      $region37: #{tpu_custom_call.1} parent=5 // pred_check
        %p424 = pneg %p423
      $region38: #{tpu_custom_call.1} parent=5 // pred_check_branch
        %426 = sbr.rel (%p424) target = $region40
      $region39: #{tpu_custom_call.1} parent=5 // pred_region
        %s427 = ssub.s32 %s12, 2
        // Predicated region
        $region41: #{tpu_custom_call.1} parent=39 // pred_check
          %p428 = pneg %p109
        $region42: #{tpu_custom_call.1} parent=39 // pred_check_branch
          %430 = sbr.rel (%p428) target = $region44
        $region43: #{tpu_custom_call.1} parent=39 // pred_region
          %s431 = sand.u32 %s94, 1
          %s432 = scalar_lea.sflag [#allocation4], %s431
          %s433 = sand.u32 %s94, 1
          %s434 = smul.addr %s433, 16
          %s435 = scalar_lea.vmem [#allocation3], %s434
          %436 = dma.done %s432, 256
        $region44: #{tpu_custom_call.1} parent=39 // pred_fallthru
          _
      $region40: #{tpu_custom_call.1} parent=5 // pred_fallthru
        _
    $region6: #{tpu_custom_call.1} parent=1 // loop_footer
      %s16 = sadd.s32 1, %s12
    $region7: #{tpu_custom_call.1} parent=1 // loop_footer_branch
      %11 = sbr.rel target = $region3
    $region8: #{tpu_custom_call.1} parent=1 // loop_exit
      _
    %437 = vsyncpa [#allocation4], 1
    %s438 = scalar_lea.sflag [#allocation4], 1
    %439 = vsyncpa %s438, 1

</llo_original>
